<compile_context>
chip_gen: v7x
topology: tpu7x:2x2x1
jax: 0.10.0
libtpu: 0.0.40
codegen_flags: <defaults>
</compile_context>

<pallas_src>
import jax
import jax.numpy as jnp
from jax import lax
from jax.experimental import pallas as pl
from jax.experimental.pallas import tpu as pltpu


def _pool_fc_kernel(h_ref, m_ref, w_ref, b_ref, o_ref, sum_acc, cnt_acc):
    """One (batch-tile, seq-tile) grid step of masked average pool + linear head.

    h_ref:   [TB, TS, H]  last_hidden_state tile (native dtype, e.g. bf16/f32)
    m_ref:   [TB, 1, TS]  attention-mask tile, pre-cast to the hidden dtype
    w_ref:   [C, H]       fc weight (torch layout, no wrapper-side transpose)
    b_ref:   [1, C]       fc bias
    o_ref:   [TB, C]      logits tile (f32), resident across the seq grid axis
    sum_acc: [TB, 1, H]   f32 masked-sum accumulator (VMEM scratch)
    cnt_acc: [TB, 1, 1]   f32 mask-count accumulator (VMEM scratch)
    """
    j = pl.program_id(1)

    @pl.when(j == 0)
    def _():
        sum_acc[...] = jnp.zeros_like(sum_acc)
        cnt_acc[...] = jnp.zeros_like(cnt_acc)

    h = h_ref[...]                                   # [TB, TS, H] native dtype
    m = m_ref[...]                                   # [TB, 1, TS] same dtype as h

    # Masked sum over the sequence axis as a batched MXU contraction with f32
    # accumulation (mask values are exactly 0/1, so multiply-by-mask is exact).
    sum_acc[...] += jnp.einsum('bqs,bsh->bqh', m, h,
                               preferred_element_type=jnp.float32)
    # Token counts (0/1 values are exact in bf16; sum in f32).
    cnt_acc[...] += jnp.sum(m.astype(jnp.float32), axis=2, keepdims=True)

    @pl.when(j == pl.num_programs(1) - 1)
    def _():
        # NOTE: an all-padded row gives 0/0 = NaN, exactly like the PyTorch
        # reference; clamp cnt_acc here if that case must be made safe.
        feature = (sum_acc[...] / cnt_acc[...])[:, 0, :]        # [TB, H] f32
        # fc: feature @ W^T + b, contracting the hidden dim of both operands
        # (torch-layout weight, no transpose materialized).
        logits = lax.dot_general(
            feature, w_ref[...].astype(jnp.float32),
            dimension_numbers=(((1,), (1,)), ((), ())),
            preferred_element_type=jnp.float32,
        ) + b_ref[...].astype(jnp.float32)
        o_ref[...] = logits


def _vmem_class():
    """Returns (scoped_vmem_cap, tile_byte_budget) for the current chip."""
    kind = ""
    try:
        kind = jax.devices()[0].device_kind.lower()
    except Exception:
        pass
    cap = 0
    try:
        cap = int(pltpu.get_tpu_info().vmem_capacity_bytes)
    except Exception:
        pass
    # Only use the large budget when we positively identify a 128 MiB-class
    # part (v5e/v6e); otherwise stay v7x-safe (64 MiB per TensorCore).
    big_vmem = (cap >= (100 << 20)) and ("v7" not in kind)
    if big_vmem:
        return (100 << 20, 90 << 20)
    return (48 << 20, 40 << 20)


def custom_model_head(last_hidden_state, attention_mask, fc_weight, fc_bias,
                      *, batch_tile=None, seq_tile=None):
    """Pallas-backed equivalent of CustomModel.forward given backbone outputs.

    last_hidden_state: [B, S, H]  (any float dtype; bf16 is consumed as bf16)
    attention_mask:    [B, S]     (int or float, 0/1)
    fc_weight:         [C, H]     torch nn.Linear weight layout
    fc_bias:           [C]
    returns:           [B, C]     float32 logits
    """
    B, S, H = last_hidden_state.shape
    C = fc_weight.shape[0]

    h = last_hidden_state                            # keep native dtype
    # Pre-cast mask to the hidden dtype and add the size-1 "row" dim the MXU
    # contraction uses; this is a tiny wrapper-side op on a [B, S] array.
    m = attention_mask[:, None, :].astype(h.dtype)   # [B, 1, S]
    w = fc_weight                                    # torch layout [C, H]
    b = fc_bias.reshape(1, C)

    h_item = jnp.dtype(h.dtype).itemsize
    m_item = jnp.dtype(m.dtype).itemsize

    vmem_cap_limit, tile_budget = _vmem_class()

    # --- batch tile: must be a multiple of 8 (mask/out sublane rule) or == B;
    #     default keeps >= 2 "parallel" grid steps so both v7x TCs get work. ---
    if batch_tile is not None:
        TB = int(batch_tile)
    elif B % 8 == 0 and B > 8:
        TB = 8
    else:
        TB = B
    if B % TB != 0:
        raise ValueError(f"batch_tile={TB} must divide batch size {B}")
    if TB != B and TB % 8 != 0:
        raise ValueError(f"batch_tile={TB} must be a multiple of 8 or equal {B}")

    # --- seq tile sized from the byte budget for double-buffered h tiles,
    #     rounded down to a multiple of 128 that divides S (or full S). ---
    if seq_tile is not None:
        TS = int(seq_tile)
    else:
        cand = tile_budget // max(2 * TB * H * h_item, 1)
        if cand >= S:
            TS = S
        else:
            cand = max((cand // 128) * 128, 128)
            TS = S                       # full extent is always a legal fallback
            for ts in range(cand, 0, -128):
                if S % ts == 0:
                    TS = ts
                    break
    if S % TS != 0:
        raise ValueError(f"seq_tile={TS} must divide sequence length {S}")
    if TS != S and TS % 128 != 0:
        raise ValueError(f"seq_tile={TS} must be a multiple of 128 or equal {S}")

    # --- scoped VMEM request: double-buffered input tiles + tiny weights/scratch,
    #     clamped below physical VMEM for the chip generation. ---
    in_tile_bytes = TB * TS * H * h_item + TB * TS * m_item
    small_bytes = 4 * (C * H + C + TB * C + 2 * TB * H + TB)
    vmem_limit = int(min(vmem_cap_limit,
                         max(32 << 20, 2 * in_tile_bytes + small_bytes + (4 << 20))))

    grid = (B // TB, S // TS)                        # seq (reduction) axis last

    return pl.pallas_call(
        _pool_fc_kernel,
        out_shape=jax.ShapeDtypeStruct((B, C), jnp.float32),
        grid_spec=pltpu.PrefetchScalarGridSpec(
            num_scalar_prefetch=0,
            grid=grid,
            in_specs=[
                pl.BlockSpec((TB, TS, H), lambda i, j: (i, j, 0)),
                pl.BlockSpec((TB, 1, TS), lambda i, j: (i, 0, j)),
                pl.BlockSpec((C, H), lambda i, j: (0, 0)),   # weight loaded once
                pl.BlockSpec((1, C), lambda i, j: (0, 0)),   # bias loaded once
            ],
            # Output block constant over the seq axis -> resident accumulator,
            # written to HBM only once per batch tile.
            out_specs=pl.BlockSpec((TB, C), lambda i, j: (i, 0)),
            scratch_shapes=[
                pltpu.VMEM((TB, 1, H), jnp.float32),   # masked-sum accumulator
                pltpu.VMEM((TB, 1, 1), jnp.float32),   # mask-count accumulator
            ],
        ),
        compiler_params=pltpu.CompilerParams(
            dimension_semantics=("parallel", "arbitrary"),
            vmem_limit_bytes=vmem_limit,
        ),
    )(h, m, w, b)


if __name__ == "__main__":
    # Small shapes consistent with the forward pass.
    B, S, H, NUM_CLASSES = 2, 8, 32, 4
    INITIALIZER_RANGE = 0.02

    key = jax.random.PRNGKey(0)
    k_hidden, k_w, k_hidden2 = jax.random.split(key, 3)

    # Synthetic backbone output (stands in for AutoModel last_hidden_state).
    last_hidden_state = jax.random.normal(k_hidden, (B, S, H), dtype=jnp.float32)

    # Attention mask: first example fully attended, second padded after 5 tokens.
    attention_mask = jnp.array(
        [[1] * S,
         [1] * 5 + [0] * (S - 5)],
        dtype=jnp.int32,
    )

    # Deterministic fc init matching _init_weights:
    #   weight ~ Normal(0, initializer_range), bias = 0
    fc_weight = INITIALIZER_RANGE * jax.random.normal(
        k_w, (NUM_CLASSES, H), dtype=jnp.float32)
    fc_bias = jnp.zeros((NUM_CLASSES,), dtype=jnp.float32)

    def reference(hid, mask, w, bias):
        maskf = mask.astype(jnp.float32)
        masked = jnp.where(maskf[:, :, None] != 0.0, hid.astype(jnp.float32), 0.0)
        feat = masked.sum(axis=1) / maskf.sum(axis=1)[:, None]
        return feat @ w.T + bias

    # Test 1: tiny shapes (single grid step).
    out = custom_model_head(last_hidden_state, attention_mask, fc_weight, fc_bias)
    out = jax.block_until_ready(out)
    ref = reference(last_hidden_state, attention_mask, fc_weight, fc_bias)
    assert out.shape == (B, NUM_CLASSES)
    assert jnp.allclose(out, ref, atol=1e-4, rtol=1e-3), (out, ref)

    # Test 2: longer sequence exercising the tiled (multi-step) seq reduction.
    S2 = 256
    h2 = jax.random.normal(k_hidden2, (B, S2, H), dtype=jnp.float32)
    mask2 = jnp.concatenate(
        [jnp.ones((B, 200), dtype=jnp.int32),
         jnp.zeros((B, S2 - 200), dtype=jnp.int32)], axis=1)
    out2 = custom_model_head(h2, mask2, fc_weight, fc_bias, seq_tile=128)
    out2 = jax.block_until_ready(out2)
    ref2 = reference(h2, mask2, fc_weight, fc_bias)
    assert out2.shape == (B, NUM_CLASSES)
    assert jnp.allclose(out2, ref2, atol=1e-4, rtol=1e-3), (out2, ref2)

    # Test 3: bf16 backbone output exercising the native-dtype MXU path.
    h3 = h2.astype(jnp.bfloat16)
    out3 = custom_model_head(h3, mask2, fc_weight, fc_bias, seq_tile=128)
    out3 = jax.block_until_ready(out3)
    ref3 = reference(h3.astype(jnp.float32), mask2, fc_weight, fc_bias)
    assert out3.shape == (B, NUM_CLASSES)
    assert jnp.allclose(out3, ref3, atol=1e-4, rtol=1e-3), (out3, ref3)

    print("KERNEL_OK")
</pallas_src>

<mosaic_0001>
module attributes {stable_mosaic.version = 11 : i64} {
  func.func @_pool_fc_kernel(%arg0: i32, %arg1: i32, %arg2: memref<2x8x32xf32, #tpu.memory_space<vmem>>, %arg3: memref<2x1x8xf32, #tpu.memory_space<vmem>>, %arg4: memref<4x32xf32, #tpu.memory_space<vmem>>, %arg5: memref<1x4xf32, #tpu.memory_space<vmem>>, %arg6: memref<2x4xf32, #tpu.memory_space<vmem>>, %arg7: memref<2x1x32xf32, #tpu.memory_space<vmem>>, %arg8: memref<2x1x1xf32, #tpu.memory_space<vmem>>) attributes {dimension_semantics = [#tpu.dimension_semantics<parallel>, #tpu.dimension_semantics<arbitrary>], iteration_bounds = array<i64: 1, 1>, scalar_prefetch = 0 : i64, scratch_operands = 2 : i64, tpu.core_type = #tpu.core_type<tc>, window_params = [{transform_indices = @transform_0, window_bounds = array<i64: 2, 8, 32>}, {transform_indices = @transform_1, window_bounds = array<i64: 2, 1, 8>}, {pipeline_mode = #tpu.pipeline_mode<synchronous>, transform_indices = @transform_2, window_bounds = array<i64: 4, 32>}, {pipeline_mode = #tpu.pipeline_mode<synchronous>, transform_indices = @transform_3, window_bounds = array<i64: 1, 4>}, {transform_indices = @transform_4, window_bounds = array<i64: 2, 4>}]} {
    %c0_i32 = arith.constant 0 : i32
    %0 = arith.cmpi eq, %arg1, %c0_i32 : i32
    %1 = arith.extui %0 : i1 to i32
    %c0_i32_0 = arith.constant 0 : i32
    %2 = arith.cmpi ne, %1, %c0_i32_0 : i32
    scf.if %2 {
      %cst_21 = arith.constant 0.000000e+00 : f32
      %17 = vector.broadcast %cst_21 : f32 to vector<2x1x32xf32>
      %c0_22 = arith.constant 0 : index
      %c0_23 = arith.constant 0 : index
      %c0_24 = arith.constant 0 : index
      %18 = vector.load %arg7[%c0_22, %c0_23, %c0_24] : memref<2x1x32xf32, #tpu.memory_space<vmem>>, vector<2x1x32xf32>
      tpu.vector_store %arg7[%c0_22, %c0_23, %c0_24], %17 {strides = array<i32>} : memref<2x1x32xf32, #tpu.memory_space<vmem>>, vector<2x1x32xf32>,
      %cst_25 = arith.constant 0.000000e+00 : f32
      %19 = vector.broadcast %cst_25 : f32 to vector<2x1x1xf32>
      %c0_26 = arith.constant 0 : index
      %c0_27 = arith.constant 0 : index
      %c0_28 = arith.constant 0 : index
      %20 = vector.load %arg8[%c0_26, %c0_27, %c0_28] : memref<2x1x1xf32, #tpu.memory_space<vmem>>, vector<2x1x1xf32>
      tpu.vector_store %arg8[%c0_26, %c0_27, %c0_28], %19 {strides = array<i32>} : memref<2x1x1xf32, #tpu.memory_space<vmem>>, vector<2x1x1xf32>,
    } else {
    }
    %c0 = arith.constant 0 : index
    %c0_1 = arith.constant 0 : index
    %c0_2 = arith.constant 0 : index
    %3 = vector.load %arg2[%c0, %c0_1, %c0_2] : memref<2x8x32xf32, #tpu.memory_space<vmem>>, vector<2x8x32xf32>
    %c0_3 = arith.constant 0 : index
    %c0_4 = arith.constant 0 : index
    %c0_5 = arith.constant 0 : index
    %4 = vector.load %arg3[%c0_3, %c0_4, %c0_5] : memref<2x1x8xf32, #tpu.memory_space<vmem>>, vector<2x1x8xf32>
    %c0_6 = arith.constant 0 : index
    %c0_7 = arith.constant 0 : index
    %c0_8 = arith.constant 0 : index
    %5 = vector.load %arg7[%c0_6, %c0_7, %c0_8] : memref<2x1x32xf32, #tpu.memory_space<vmem>>, vector<2x1x32xf32>
    "tpu.trace_start"() <{level = 10 : i32, message = "bqs,bsh->bqh"}> : () -> ()
    %cst = arith.constant dense<0.000000e+00> : vector<2x1x32xf32>
    %6 = tpu.matmul %4, %3, %cst {dimension_numbers = #tpu.dot_dimension_numbers<[2], [1], [1], [2], [0, 0, 0, 1, 1, 2], [0], [0]>} : vector<2x1x8xf32>, vector<2x8x32xf32>, vector<2x1x32xf32> -> vector<2x1x32xf32>
    "tpu.trace_stop"() : () -> ()
    %7 = arith.addf %5, %6 : vector<2x1x32xf32>
    %c0_9 = arith.constant 0 : index
    %c0_10 = arith.constant 0 : index
    %c0_11 = arith.constant 0 : index
    %8 = vector.load %arg7[%c0_9, %c0_10, %c0_11] : memref<2x1x32xf32, #tpu.memory_space<vmem>>, vector<2x1x32xf32>
    tpu.vector_store %arg7[%c0_9, %c0_10, %c0_11], %7 {strides = array<i32>} : memref<2x1x32xf32, #tpu.memory_space<vmem>>, vector<2x1x32xf32>,
    %c0_12 = arith.constant 0 : index
    %c0_13 = arith.constant 0 : index
    %c0_14 = arith.constant 0 : index
    %9 = vector.load %arg8[%c0_12, %c0_13, %c0_14] : memref<2x1x1xf32, #tpu.memory_space<vmem>>, vector<2x1x1xf32>
    %cst_15 = arith.constant dense<0.000000e+00> : vector<2x1xf32>
    %10 = vector.multi_reduction <add>, %4, %cst_15 [2] : vector<2x1x8xf32> to vector<2x1xf32>
    %11 = vector.shape_cast %10 : vector<2x1xf32> to vector<2x1x1xf32>
    %12 = arith.addf %9, %11 : vector<2x1x1xf32>
    %c0_16 = arith.constant 0 : index
    %c0_17 = arith.constant 0 : index
    %c0_18 = arith.constant 0 : index
    %13 = vector.load %arg8[%c0_16, %c0_17, %c0_18] : memref<2x1x1xf32, #tpu.memory_space<vmem>>, vector<2x1x1xf32>
    tpu.vector_store %arg8[%c0_16, %c0_17, %c0_18], %12 {strides = array<i32>} : memref<2x1x1xf32, #tpu.memory_space<vmem>>, vector<2x1x1xf32>,
    %c0_i32_19 = arith.constant 0 : i32
    %14 = arith.cmpi eq, %arg1, %c0_i32_19 : i32
    %15 = arith.extui %14 : i1 to i32
    %c0_i32_20 = arith.constant 0 : i32
    %16 = arith.cmpi ne, %15, %c0_i32_20 : i32
    scf.if %16 {
      %c0_21 = arith.constant 0 : index
      %c0_22 = arith.constant 0 : index
      %c0_23 = arith.constant 0 : index
      %17 = vector.load %arg7[%c0_21, %c0_22, %c0_23] : memref<2x1x32xf32, #tpu.memory_space<vmem>>, vector<2x1x32xf32>
      %c0_24 = arith.constant 0 : index
      %c0_25 = arith.constant 0 : index
      %c0_26 = arith.constant 0 : index
      %18 = vector.load %arg8[%c0_24, %c0_25, %c0_26] : memref<2x1x1xf32, #tpu.memory_space<vmem>>, vector<2x1x1xf32>
      %19 = vector.broadcast %18 : vector<2x1x1xf32> to vector<2x1x32xf32>
      %20 = arith.divf %17, %19 : vector<2x1x32xf32>
      %21 = vector.shape_cast %20 : vector<2x1x32xf32> to vector<2x32xf32>
      %c0_27 = arith.constant 0 : index
      %c0_28 = arith.constant 0 : index
      %22 = vector.load %arg4[%c0_27, %c0_28] : memref<4x32xf32, #tpu.memory_space<vmem>>, vector<4x32xf32>
      %cst_29 = arith.constant dense<0.000000e+00> : vector<2x4xf32>
      %23 = tpu.matmul %21, %22, %cst_29 {dimension_numbers = #tpu.dot_dimension_numbers<[1], [1], [0], [0], [0, 0, 1, 0], [], []>} : vector<2x32xf32>, vector<4x32xf32>, vector<2x4xf32> -> vector<2x4xf32>
      %c0_30 = arith.constant 0 : index
      %c0_31 = arith.constant 0 : index
      %24 = vector.load %arg5[%c0_30, %c0_31] : memref<1x4xf32, #tpu.memory_space<vmem>>, vector<1x4xf32>
      %25 = vector.broadcast %24 : vector<1x4xf32> to vector<2x4xf32>
      %26 = arith.addf %23, %25 : vector<2x4xf32>
      %c0_32 = arith.constant 0 : index
      %c0_33 = arith.constant 0 : index
      %27 = vector.load %arg6[%c0_32, %c0_33] : memref<2x4xf32, #tpu.memory_space<vmem>>, vector<2x4xf32>
      tpu.vector_store %arg6[%c0_32, %c0_33], %26 {strides = array<i32>} : memref<2x4xf32, #tpu.memory_space<vmem>>, vector<2x4xf32>,
    } else {
    }
    return
  }
  func.func @transform_0(%arg0: i32, %arg1: i32) -> (i32, i32, i32) {
    %c0_i32 = arith.constant 0 : i32
    %c0_i32_0 = arith.constant 0 : i32
    return %arg0, %arg1, %c0_i32 : i32, i32, i32
  }
  func.func @transform_1(%arg0: i32, %arg1: i32) -> (i32, i32, i32) {
    %c0_i32 = arith.constant 0 : i32
    %c0_i32_0 = arith.constant 0 : i32
    return %arg0, %c0_i32, %arg1 : i32, i32, i32
  }
  func.func @transform_2(%arg0: i32, %arg1: i32) -> (i32, i32) {
    %c0_i32 = arith.constant 0 : i32
    %c0_i32_0 = arith.constant 0 : i32
    %c0_i32_1 = arith.constant 0 : i32
    return %c0_i32, %c0_i32_0 : i32, i32
  }
  func.func @transform_3(%arg0: i32, %arg1: i32) -> (i32, i32) {
    %c0_i32 = arith.constant 0 : i32
    %c0_i32_0 = arith.constant 0 : i32
    %c0_i32_1 = arith.constant 0 : i32
    return %c0_i32, %c0_i32_0 : i32, i32
  }
  func.func @transform_4(%arg0: i32, %arg1: i32) -> (i32, i32) {
    %c0_i32 = arith.constant 0 : i32
    %c0_i32_0 = arith.constant 0 : i32
    return %arg0, %c0_i32 : i32, i32
  }
}

</mosaic_0001>

<llo_original>
// kernel: tpu_custom_call.1
$region0: #{tpu_custom_call.1}
  #allocation0 [shape = 'u32[]', space=smem, size = 0x4, offset = 0x4, fixed_abs, tag = 'smem constant byte address 0x4 - core index']
  #allocation1 [shape = 'u32[144,128]{1,0:T(1,128)}', space=vmem, size = 0x12000, scoped, tag = 'internal scratch']
  #allocation2 [shape = 'f32[2,1,32]{2,1,0:T(1,128)}', space=vmem, size = 0x400, scoped, tag = 'scratch operand']
  #allocation3 [shape = 'f32[2,1,1]{2,1,0:T(1,128)}', space=vmem, size = 0x400, scoped, tag = 'scratch operand']
  %s0 = inlined_call_operand.hbm [shape: f32[2,8,32], index: 0, kind: input, shape index: {}]
  %s1 = inlined_call_operand.vmem [shape: f32[2,1,8], index: 1, kind: input, shape index: {}]
  %s2 = inlined_call_operand.vmem [shape: f32[4,32], index: 2, kind: input, shape index: {}]
  %s3 = inlined_call_operand.vmem [shape: f32[1,4], index: 3, kind: input, shape index: {}]
  %s4 = inlined_call_operand.hbm [shape: f32[2,4], index: 4, kind: output, shape index: {}]
  %s5 = sld [smem:[#allocation0]]
  $region38: #{tpu_custom_call.1} parent=0
    _
  %s7 = ssub.s32 1, %s5
  %s8 = scalar_select 0, %s7, %s5
  $region1: #{tpu_custom_call.1} parent=0
    #allocation4 [shape = 'u8[8192]{0}', space=vmem, size = 0x2000, scoped, tag = 'input window, operand 0, single buffered']
    #allocation5 [shape = 's32[1]{0}', space=sflag, size = 0x4, scoped, tag = 'scoped memory for tpu_custom_call.1']
    #allocation6 [shape = 's32[1]{0}', space=sflag, size = 0x4, scoped, tag = 'scoped memory for tpu_custom_call.1']
    #allocation7 [shape = 'u8[1024]{0}', space=vmem, size = 0x400, scoped, tag = 'output window, operand 0, single buffered']
    %9 = vsyncpa [#allocation5], 0
    %10 = vsyncpa [#allocation6], 0
    // Predicated region
    $region2: #{tpu_custom_call.1} parent=1 // pred_check
      _
    $region3: #{tpu_custom_call.1} parent=1 // pred_check_branch
      %12 = sbr.rel (0) target = $region5
    $region4: #{tpu_custom_call.1} parent=1 // pred_region
      %s14 = ssub.s32 256, 256
      %15 = vsyncadd [#allocation5], %s14
      %s16 = sshll.u32 [#allocation4], 4
      %s17 = int_to_ptr.vmem [resolvable:$true] %s16
      %22 = dma.hbm_to_vmem [thread:$0]  %s0, 256, %s17, [#allocation5], 128, 128, 8
    $region5: #{tpu_custom_call.1} parent=1 // pred_fallthru
      _
    // Predicated region
    $region6: #{tpu_custom_call.1} parent=1 // pred_check
      _
    $region7: #{tpu_custom_call.1} parent=1 // pred_check_branch
      %24 = sbr.rel (0) target = $region9
    $region8: #{tpu_custom_call.1} parent=1 // pred_region
      _
    $region9: #{tpu_custom_call.1} parent=1 // pred_fallthru
      _
    // Predicated region
    $region10: #{tpu_custom_call.1} parent=1 // pred_check
      _
    $region11: #{tpu_custom_call.1} parent=1 // pred_check_branch
      %26 = sbr.rel (0) target = $region13
    $region12: #{tpu_custom_call.1} parent=1 // pred_region
      _
    $region13: #{tpu_custom_call.1} parent=1 // pred_fallthru
      _
    // Predicated region
    $region14: #{tpu_custom_call.1} parent=1 // pred_check
      _
    $region15: #{tpu_custom_call.1} parent=1 // pred_check_branch
      %28 = sbr.rel (0) target = $region17
    $region16: #{tpu_custom_call.1} parent=1 // pred_region
      _
    $region17: #{tpu_custom_call.1} parent=1 // pred_fallthru
      _
    // Predicated region
    $region18: #{tpu_custom_call.1} parent=1 // pred_check
      _
    $region19: #{tpu_custom_call.1} parent=1 // pred_check_branch
      %30 = sbr.rel (0) target = $region21
    $region20: #{tpu_custom_call.1} parent=1 // pred_region
      %31 = dma.done [#allocation5], 256
    $region21: #{tpu_custom_call.1} parent=1 // pred_fallthru
      _
    %p32 = scmp.eq.s32.totalorder 0, 0
    // Predicated region
    $region22: #{tpu_custom_call.1} parent=1 // pred_check
      %p33 = pneg %p32
    $region23: #{tpu_custom_call.1} parent=1 // pred_check_branch
      %35 = sbr.rel (%p33) target = $region25
    $region24: #{tpu_custom_call.1} parent=1 // pred_region
      %vm36 = vcmask 253952
      %37 = vst.msk [vmem:[#allocation2] sm:$0x1] %vm36, 0.0
      %38 = vst.msk [vmem:[#allocation2 + $0x1] sm:$0x1] %vm36, 0.0
      %vm39 = vcmask 0
      %40 = vst.msk [vmem:[#allocation3] sm:$0x1] %vm39, 0.0
      %41 = vst.msk [vmem:[#allocation3 + $0x1] sm:$0x1] %vm39, 0.0
    $region25: #{tpu_custom_call.1} parent=1 // pred_fallthru
      _
    %v42 = vld [vmem:[#allocation4] sm:$0xff]
    %v43 = vld [vmem:[#allocation4 + $0x8] sm:$0xff]
    %v44 = vld [vmem:[%s1] sm:$0x1]
    %v45 = vld [vmem:[%s1 + $0x1] sm:$0x1]
    %v46 = vld [vmem:[#allocation2] sm:$0x1]
    %v47 = vld [vmem:[#allocation2 + $0x1] sm:$0x1]
    %vm48 = vcmask 64512
    %v50 = vsel %vm48, %v44, 0
    %52 = vmatprep.subr.mxu0 0.0
    %53 = vmatpush1.msra.mxu0 %v42
    %54 = vmatprep.subr.mxu0 0.0
    %55 = vmatpush1.msra.mxu0 0.0
    %56 = vmatprep.subr.mxu0 0.0
    %57 = vmatpush1.msra.mxu0 0.0
    %58 = vmatprep.subr.mxu0 0.0
    %59 = vmatpush1.msra.mxu0 0.0
    %60 = vmatprep.subr.mxu0 0.0
    %61 = vmatpush1.msra.mxu0 0.0
    %62 = vmatprep.subr.mxu0 0.0
    %63 = vmatpush1.msra.mxu0 0.0
    %64 = vmatprep.subr.mxu0 0.0
    %65 = vmatpush1.msra.mxu0 0.0
    %66 = vmatprep.subr.mxu0 0.0
    %67 = vmatpush1.msra.mxu0 0.0
    %68 = vmatprep.subr.mxu0 0.0
    %69 = vmatpush1.msra.mxu0 0.0
    %70 = vmatprep.subr.mxu0 0.0
    %71 = vmatpush1.msra.mxu0 0.0
    %72 = vmatprep.subr.mxu0 0.0
    %73 = vmatpush1.msra.mxu0 0.0
    %74 = vmatprep.subr.mxu0 0.0
    %75 = vmatpush1.msra.mxu0 0.0
    %76 = vmatprep.subr.mxu0 0.0
    %77 = vmatpush1.msra.mxu0 0.0
    %78 = vmatprep.subr.mxu0 0.0
    %79 = vmatpush1.msra.mxu0 0.0
    %80 = vmatprep.subr.mxu0 0.0
    %81 = vmatpush1.msra.mxu0 0.0
    %82 = vmatprep.subr.mxu0 0.0
    %83 = vmatpush1.msra.mxu0 0.0
    %84 = vmatprep.subr.mxu0 0.0
    %85 = vmatpush1.msra.mxu0 0.0
    %86 = vmatprep.subr.mxu0 0.0
    %87 = vmatpush1.msra.mxu0 0.0
    %88 = vmatprep.subr.mxu0 0.0
    %89 = vmatpush1.msra.mxu0 0.0
    %90 = vmatprep.subr.mxu0 0.0
    %91 = vmatpush1.msra.mxu0 0.0
    %92 = vmatprep.subr.mxu0 0.0
    %93 = vmatpush1.msra.mxu0 0.0
    %94 = vmatprep.subr.mxu0 0.0
    %95 = vmatpush1.msra.mxu0 0.0
    %96 = vmatprep.subr.mxu0 0.0
    %97 = vmatpush1.msra.mxu0 0.0
    %98 = vmatprep.subr.mxu0 0.0
    %99 = vmatpush1.msra.mxu0 0.0
    %100 = vmatprep.subr.mxu0 0.0
    %101 = vmatpush1.msra.mxu0 0.0
    %102 = vmatprep.subr.mxu0 0.0
    %103 = vmatpush1.msra.mxu0 0.0
    %104 = vmatprep.subr.mxu0 0.0
    %105 = vmatpush1.msra.mxu0 0.0
    %106 = vmatprep.subr.mxu0 0.0
    %107 = vmatpush1.msra.mxu0 0.0
    %108 = vmatprep.subr.mxu0 0.0
    %109 = vmatpush1.msra.mxu0 0.0
    %110 = vmatprep.subr.mxu0 0.0
    %111 = vmatpush1.msra.mxu0 0.0
    %112 = vmatprep.subr.mxu0 0.0
    %113 = vmatpush1.msra.mxu0 0.0
    %114 = vmatprep.subr.mxu0 0.0
    %115 = vmatpush1.msra.mxu0 0.0
    %116 = vmatprep.mubr.f32.mxu0 0.0
    %117 = vmatmul.mubr.f32.gmra.mrb[0].mxu0 %v50
    %v118 = vpop.f32.mrb[0].mxu0
    %v119 = vadd.f32 0.0, %v118
    %v120 = vpop.f32.mrb[0].mxu0
    %121 = vdwg.mxu0
    %v123 = vsel %vm48, %v45, 0
    %125 = vmatprep.subr.mxu0 0.0
    %126 = vmatpush1.msra.mxu0 %v43
    %127 = vmatprep.subr.mxu0 0.0
    %128 = vmatpush1.msra.mxu0 0.0
    %129 = vmatprep.subr.mxu0 0.0
    %130 = vmatpush1.msra.mxu0 0.0
    %131 = vmatprep.subr.mxu0 0.0
    %132 = vmatpush1.msra.mxu0 0.0
    %133 = vmatprep.subr.mxu0 0.0
    %134 = vmatpush1.msra.mxu0 0.0
    %135 = vmatprep.subr.mxu0 0.0
    %136 = vmatpush1.msra.mxu0 0.0
    %137 = vmatprep.subr.mxu0 0.0
    %138 = vmatpush1.msra.mxu0 0.0
    %139 = vmatprep.subr.mxu0 0.0
    %140 = vmatpush1.msra.mxu0 0.0
    %141 = vmatprep.subr.mxu0 0.0
    %142 = vmatpush1.msra.mxu0 0.0
    %143 = vmatprep.subr.mxu0 0.0
    %144 = vmatpush1.msra.mxu0 0.0
    %145 = vmatprep.subr.mxu0 0.0
    %146 = vmatpush1.msra.mxu0 0.0
    %147 = vmatprep.subr.mxu0 0.0
    %148 = vmatpush1.msra.mxu0 0.0
    %149 = vmatprep.subr.mxu0 0.0
    %150 = vmatpush1.msra.mxu0 0.0
    %151 = vmatprep.subr.mxu0 0.0
    %152 = vmatpush1.msra.mxu0 0.0
    %153 = vmatprep.subr.mxu0 0.0
    %154 = vmatpush1.msra.mxu0 0.0
    %155 = vmatprep.subr.mxu0 0.0
    %156 = vmatpush1.msra.mxu0 0.0
    %157 = vmatprep.subr.mxu0 0.0
    %158 = vmatpush1.msra.mxu0 0.0
    %159 = vmatprep.subr.mxu0 0.0
    %160 = vmatpush1.msra.mxu0 0.0
    %161 = vmatprep.subr.mxu0 0.0
    %162 = vmatpush1.msra.mxu0 0.0
    %163 = vmatprep.subr.mxu0 0.0
    %164 = vmatpush1.msra.mxu0 0.0
    %165 = vmatprep.subr.mxu0 0.0
    %166 = vmatpush1.msra.mxu0 0.0
    %167 = vmatprep.subr.mxu0 0.0
    %168 = vmatpush1.msra.mxu0 0.0
    %169 = vmatprep.subr.mxu0 0.0
    %170 = vmatpush1.msra.mxu0 0.0
    %171 = vmatprep.subr.mxu0 0.0
    %172 = vmatpush1.msra.mxu0 0.0
    %173 = vmatprep.subr.mxu0 0.0
    %174 = vmatpush1.msra.mxu0 0.0
    %175 = vmatprep.subr.mxu0 0.0
    %176 = vmatpush1.msra.mxu0 0.0
    %177 = vmatprep.subr.mxu0 0.0
    %178 = vmatpush1.msra.mxu0 0.0
    %179 = vmatprep.subr.mxu0 0.0
    %180 = vmatpush1.msra.mxu0 0.0
    %181 = vmatprep.subr.mxu0 0.0
    %182 = vmatpush1.msra.mxu0 0.0
    %183 = vmatprep.subr.mxu0 0.0
    %184 = vmatpush1.msra.mxu0 0.0
    %185 = vmatprep.subr.mxu0 0.0
    %186 = vmatpush1.msra.mxu0 0.0
    %187 = vmatprep.subr.mxu0 0.0
    %188 = vmatpush1.msra.mxu0 0.0
    %189 = vmatprep.mubr.f32.mxu0 0.0
    %190 = vmatmul.mubr.f32.gmra.mrb[0].mxu0 %v123
    %v191 = vpop.f32.mrb[0].mxu0
    %v192 = vadd.f32 0.0, %v191
    %v193 = vpop.f32.mrb[0].mxu0
    %194 = vdwg.mxu0
    %v195 = vadd.f32 %v46, %v119
    %v196 = vadd.f32 %v47, %v192
    %vm197 = vcmask 253952
    %198 = vst.msk [vmem:[#allocation2] sm:$0x1] %vm197, %v195
    %199 = vst.msk [vmem:[#allocation2 + $0x1] sm:$0x1] %vm197, %v196
    %v200 = vld [vmem:[#allocation3] sm:$0x1]
    %v201 = vld [vmem:[#allocation3 + $0x1] sm:$0x1]
    %vm202 = vcmask 57344
    %v203 = vsel %vm202, %v44, 0.0
    %204 = vadd.xlane.f32.xlu0 %v203
    %v205 = vpop.xlane.xlu0 %204
    %v206 = vsel %vm202, %v45, 0.0
    %207 = vadd.xlane.f32.xlu0 %v206
    %v208 = vpop.xlane.xlu0 %207
    %v209 = vadd.f32 %v200, %v205
    %v210 = vadd.f32 %v201, %v208
    %vm211 = vcmask 0
    %212 = vst.msk [vmem:[#allocation3] sm:$0x1] %vm211, %v209
    %213 = vst.msk [vmem:[#allocation3 + $0x1] sm:$0x1] %vm211, %v210
    // Predicated region
    $region26: #{tpu_custom_call.1} parent=1 // pred_check
      %p214 = pneg %p32
    $region27: #{tpu_custom_call.1} parent=1 // pred_check_branch
      %216 = sbr.rel (%p214) target = $region29
    $region28: #{tpu_custom_call.1} parent=1 // pred_region
      %v217 = vld [vmem:[#allocation2] sm:$0x1]
      %v218 = vld [vmem:[#allocation2 + $0x1] sm:$0x1]
      %v219 = vld [vmem:[#allocation3] sm:$0x1]
      %v220 = vld [vmem:[#allocation3 + $0x1] sm:$0x1]
      %222 = vset.pattern.permute.xlu0 0
      %223 = vperm.xlu0 %222, %v219
      %v224 = vpop.permute.xlu0 %223
      %v226 = vlaneseq
      %v227 = vshrl.u32 %v226, 7
      %v228 = vsub.s32 0, %v227
      %v229 = vrot.slane %v224, %v228
      %231 = vset.pattern.permute.xlu0 0
      %232 = vperm.xlu0 %231, %v220
      %v233 = vpop.permute.xlu0 %232
      %v235 = vlaneseq
      %v236 = vshrl.u32 %v235, 7
      %v237 = vsub.s32 0, %v236
      %v238 = vrot.slane %v233, %v237
      %v239 = vrcp.pop %v229
      %v240 = vmul.f32 %v217, %v239
      %v241 = vrcp.pop %v238
      %v242 = vmul.f32 %v218, %v241
      %v243 = vld [vmem:[%s2] sm:$0xf]
      %v244 = vld [vmem:[%s3] sm:$0x1]
      %v246 = vlaneseq
      %v247 = vshrl.u32 %v246, 7
      %v248 = vsub.s32 0, %v247
      %v249 = vrot.slane %v244, %v248
      %v253 = vcombine.low %v240, %v242
      %v255 = vunpack.c.l.s4 1966171168
      %v256 = vunpack.c.0.s8 %v255
      %v257 = vlaneseq
      %v258 = vshrl.u32 %v257, 7
      %v259 = vsub.s32 %v256, %v258
      %v260 = vrot.slane %v253, %v259
      %v262 = vunpack.c.l.s4 1966171168
      %v263 = vunpack.c.0.s8 %v262
      %v264 = vlaneseq
      %v265 = vshrl.u32 %v264, 7
      %v266 = vsub.s32 %v263, %v265
      %v267 = vrot.slane %v260, %v266
      %vm268 = vcmask 261120
      %v269 = vsel %vm268, %v267, 0
      %v272 = vsel %vm268, %v243, 0
      %274 = vmatprep.subr.mxu0 0.0
      %275 = vmatpush1.xpose.msra.mxu0 %v272
      %276 = vmatprep.subr.mxu0 0.0
      %277 = vmatpush1.xpose.msra.mxu0 0.0
      %278 = vmatprep.subr.mxu0 0.0
      %279 = vmatpush1.xpose.msra.mxu0 0.0
      %280 = vmatprep.subr.mxu0 0.0
      %281 = vmatpush1.xpose.msra.mxu0 0.0
      %282 = vmatprep.subr.mxu0 0.0
      %283 = vmatpush1.xpose.msra.mxu0 0.0
      %284 = vmatprep.subr.mxu0 0.0
      %285 = vmatpush1.xpose.msra.mxu0 0.0
      %286 = vmatprep.subr.mxu0 0.0
      %287 = vmatpush1.xpose.msra.mxu0 0.0
      %288 = vmatprep.subr.mxu0 0.0
      %289 = vmatpush1.xpose.msra.mxu0 0.0
      %290 = vmatprep.subr.mxu0 0.0
      %291 = vmatpush1.xpose.msra.mxu0 0.0
      %292 = vmatprep.subr.mxu0 0.0
      %293 = vmatpush1.xpose.msra.mxu0 0.0
      %294 = vmatprep.subr.mxu0 0.0
      %295 = vmatpush1.xpose.msra.mxu0 0.0
      %296 = vmatprep.subr.mxu0 0.0
      %297 = vmatpush1.xpose.msra.mxu0 0.0
      %298 = vmatprep.subr.mxu0 0.0
      %299 = vmatpush1.xpose.msra.mxu0 0.0
      %300 = vmatprep.subr.mxu0 0.0
      %301 = vmatpush1.xpose.msra.mxu0 0.0
      %302 = vmatprep.subr.mxu0 0.0
      %303 = vmatpush1.xpose.msra.mxu0 0.0
      %304 = vmatprep.subr.mxu0 0.0
      %305 = vmatpush1.xpose.msra.mxu0 0.0
      %306 = vmatprep.subr.mxu0 0.0
      %307 = vmatpush1.xpose.msra.mxu0 0.0
      %308 = vmatprep.subr.mxu0 0.0
      %309 = vmatpush1.xpose.msra.mxu0 0.0
      %310 = vmatprep.subr.mxu0 0.0
      %311 = vmatpush1.xpose.msra.mxu0 0.0
      %312 = vmatprep.subr.mxu0 0.0
      %313 = vmatpush1.xpose.msra.mxu0 0.0
      %314 = vmatprep.subr.mxu0 0.0
      %315 = vmatpush1.xpose.msra.mxu0 0.0
      %316 = vmatprep.subr.mxu0 0.0
      %317 = vmatpush1.xpose.msra.mxu0 0.0
      %318 = vmatprep.subr.mxu0 0.0
      %319 = vmatpush1.xpose.msra.mxu0 0.0
      %320 = vmatprep.subr.mxu0 0.0
      %321 = vmatpush1.xpose.msra.mxu0 0.0
      %322 = vmatprep.subr.mxu0 0.0
      %323 = vmatpush1.xpose.msra.mxu0 0.0
      %324 = vmatprep.subr.mxu0 0.0
      %325 = vmatpush1.xpose.msra.mxu0 0.0
      %326 = vmatprep.subr.mxu0 0.0
      %327 = vmatpush1.xpose.msra.mxu0 0.0
      %328 = vmatprep.subr.mxu0 0.0
      %329 = vmatpush1.xpose.msra.mxu0 0.0
      %330 = vmatprep.subr.mxu0 0.0
      %331 = vmatpush1.xpose.msra.mxu0 0.0
      %332 = vmatprep.subr.mxu0 0.0
      %333 = vmatpush1.xpose.msra.mxu0 0.0
      %334 = vmatprep.subr.mxu0 0.0
      %335 = vmatpush1.xpose.msra.mxu0 0.0
      %336 = vmatprep.subr.mxu0 0.0
      %337 = vmatpush1.xpose.msra.mxu0 0.0
      %338 = vmatprep.mubr.f32.mxu0 0.0
      %339 = vmatmul.mubr.f32.gmra.mrb[0].mxu0 %v269
      %v340 = vpop.f32.mrb[0].mxu0
      %v341 = vadd.f32 %v249, %v340
      %v342 = vpop.f32.mrb[0].mxu0
      %343 = vdwg.mxu0
      %vm344 = vcmask 25600
      %345 = vst.msk [vmem:[#allocation7] sm:$0x3] %vm344, %v341
    $region29: #{tpu_custom_call.1} parent=1 // pred_fallthru
      _
    // Predicated region
    $region30: #{tpu_custom_call.1} parent=1 // pred_check
      _
    $region31: #{tpu_custom_call.1} parent=1 // pred_check_branch
      %347 = sbr.rel (0) target = $region33
    $region32: #{tpu_custom_call.1} parent=1 // pred_region
      %s349 = ssub.s32 32, 32
      %350 = vsyncadd [#allocation6], %s349
      %s352 = sshll.u32 [#allocation7], 4
      %s353 = int_to_ptr.vmem [resolvable:$true] %s352
      %355 = dma.vmem_to_hbm [thread:$0]  %s353, 32, %s4, [#allocation6]
    $region33: #{tpu_custom_call.1} parent=1 // pred_fallthru
      _
    // Predicated region
    $region34: #{tpu_custom_call.1} parent=1 // pred_check
      _
    $region35: #{tpu_custom_call.1} parent=1 // pred_check_branch
      %357 = sbr.rel (0) target = $region37
    $region36: #{tpu_custom_call.1} parent=1 // pred_region
      %358 = dma.done [#allocation6], 32
    $region37: #{tpu_custom_call.1} parent=1 // pred_fallthru
      _
    %359 = vsyncpa [#allocation5], 1
    %360 = vsyncpa [#allocation6], 1

</llo_original>
